<compile_context>
chip_gen: v7x
topology: tpu7x:2x2x1
jax: 0.10.0
libtpu: 0.0.40
codegen_flags: <defaults>
</compile_context>

<pallas_src>
import math
import functools

import jax
import jax.numpy as jnp
from jax.experimental import pallas as pl
from jax.experimental.pallas import tpu as pltpu

# ----------------------------------------------------------------------------
# "cfg" constants (mirroring cfg.MODEL.ROI_* fields, small synthetic values)
# ----------------------------------------------------------------------------
NUM_CLASSES = 8                # cfg.MODEL.ROI_HEADS.NUM_CLASSES
POOLER_RESOLUTION = 4          # cfg.MODEL.ROI_BOX_HEAD.POOLER_RESOLUTION
FEATURE_STRIDE = 4             # input_shape["p2"].stride
IN_CHANNELS = 4                # input_shape["p2"].channels
FC_DIM = 32                    # cfg.MODEL.ROI_BOX_HEAD.FC_DIM
BBOX_REG_WEIGHTS = (10.0, 10.0, 5.0, 5.0)   # Box2BoxTransform weights
SCALE_CLAMP = math.log(1000.0 / 16.0)
SCORE_THRESH_TEST = 0.05       # cfg.MODEL.ROI_HEADS.SCORE_THRESH_TEST
IMAGE_SIZE = (64, 64)          # H, W of the (synthetic) input images


def _round_up(x, m):
    return (x + m - 1) // m * m


# Kernel dimensions.
D_RAW = IN_CHANNELS * POOLER_RESOLUTION * POOLER_RESOLUTION    # 64 (no lane pad)
H_PAD = _round_up(FC_DIM, 128)                                 # 128 (hidden width)
FUSED_W = 64                                                   # fused head width
OUT_W = 5 * NUM_CLASSES                                        # 40: scores|x1|y1|x2|y2

# Fused predictor-weight column layout:  [0, K+1) cls logits, then the bbox
# deltas pre-permuted into contiguous dx | dy | dw | dh blocks of K columns.
C_DX = _round_up(NUM_CLASSES + 1, 8)       # 16
C_DY = C_DX + NUM_CLASSES                  # 24
C_DW = C_DY + NUM_CLASSES                  # 32
C_DH = C_DW + NUM_CLASSES                  # 40
assert C_DH + NUM_CLASSES <= FUSED_W


# ----------------------------------------------------------------------------
# Pallas kernel: box_head (FC->ReLU->FC->ReLU) + fused box_predictor
#                (cls + bbox in one matmul) + softmax
#                + Box2BoxTransform.apply_deltas + clip-to-image.
# ----------------------------------------------------------------------------
def _roi_box_kernel(x_ref, box_ref, w1_ref, b1_ref, w2_ref, b2_ref,
                    wo_ref, bo_ref, out_ref):
    K = NUM_CLASSES

    x = x_ref[...]                                                    # [TR, 64] bf16
    h = jnp.dot(x, w1_ref[...], preferred_element_type=jnp.float32) + b1_ref[...]
    h = jnp.maximum(h, 0.0)                                           # fc1 + relu
    h = jnp.dot(h.astype(jnp.bfloat16), w2_ref[...],
                preferred_element_type=jnp.float32) + b2_ref[...]
    h = jnp.maximum(h, 0.0)                                           # fc2 + relu

    # single fused predictor matmul: logits + all bbox deltas in 64 lanes
    fused = jnp.dot(h.astype(jnp.bfloat16), wo_ref[...],
                    preferred_element_type=jnp.float32) + bo_ref[...]  # [TR, 64]

    # softmax over class logits (FastRCNNOutputs.predict_probs)
    logits = fused[:, 0:K + 1]
    m = jnp.max(logits, axis=-1, keepdims=True)
    e = jnp.exp(logits - m)                                            # exp -> EUP
    denom = jnp.sum(e, axis=-1, keepdims=True)
    # approx=False: keeps scores near SCORE_THRESH_TEST from flipping `keep`.
    probs = e * pl.reciprocal(denom, approx=False)
    fg_scores = probs[:, :K]                                           # drop background

    # proposal geometry (Boxes -> ctr_x, ctr_y, w, h) computed in-kernel
    boxes = box_ref[...]                                               # [TR, 4] x1,y1,x2,y2
    bw = boxes[:, 2:3] - boxes[:, 0:1]
    bh = boxes[:, 3:4] - boxes[:, 1:2]
    ctr_x = boxes[:, 0:1] + 0.5 * bw
    ctr_y = boxes[:, 1:2] + 0.5 * bh

    # Box2BoxTransform.apply_deltas (+ clip to image)
    wx, wy, ww, wh = BBOX_REG_WEIGHTS
    dx = fused[:, C_DX:C_DX + K] * (1.0 / wx)
    dy = fused[:, C_DY:C_DY + K] * (1.0 / wy)
    dw = jnp.minimum(fused[:, C_DW:C_DW + K] * (1.0 / ww), SCALE_CLAMP)
    dh = jnp.minimum(fused[:, C_DH:C_DH + K] * (1.0 / wh), SCALE_CLAMP)
    pcx = dx * bw + ctr_x
    pcy = dy * bh + ctr_y
    pw = jnp.exp(dw) * bw                                              # exp -> EUP
    ph = jnp.exp(dh) * bh
    img_h, img_w = IMAGE_SIZE
    x1 = jnp.clip(pcx - 0.5 * pw, 0.0, float(img_w))
    y1 = jnp.clip(pcy - 0.5 * ph, 0.0, float(img_h))
    x2 = jnp.clip(pcx + 0.5 * pw, 0.0, float(img_w))
    y2 = jnp.clip(pcy + 0.5 * ph, 0.0, float(img_h))

    # one dense store of the whole 40-lane slab (no zero-fill, no masked rewrites)
    out_ref[...] = jnp.concatenate([fg_scores, x1, y1, x2, y2], axis=-1)


def roi_box_kernel_call(x_flat, boxes, kernel_params):
    """x_flat: [R_total, D_RAW] pooled ROI features; boxes: [R_total, 4] (x1,y1,x2,y2).

    Returns a [R_total, OUT_W] slab: cols [0,K)=scores, then x1|y1|x2|y2 per class.
    """
    R_total = x_flat.shape[0]
    w1, b1, w2, b2, wo, bo = kernel_params

    # Row tile: multiple of 16 (bf16-native sublane), capped at 512; rows padded
    # so there are always >= 2 grid steps (v7x megacore sharding of "parallel").
    r16 = _round_up(max(R_total, 16), 16)
    tile_r = min(512, _round_up((r16 + 1) // 2, 16))
    r_pad = _round_up(max(r16, 2 * tile_r), tile_r)

    x_in = x_flat.astype(jnp.bfloat16)
    boxes_in = boxes.astype(jnp.float32)
    if r_pad != R_total:
        x_in = jnp.zeros((r_pad, D_RAW), jnp.bfloat16).at[:R_total].set(x_in)
        boxes_in = jnp.zeros((r_pad, 4), jnp.float32).at[:R_total].set(boxes_in)

    grid = (r_pad // tile_r,)
    out = pl.pallas_call(
        _roi_box_kernel,
        out_shape=jax.ShapeDtypeStruct((r_pad, OUT_W), jnp.float32),
        grid=grid,
        in_specs=[
            pl.BlockSpec((tile_r, D_RAW), lambda i: (i, 0)),    # x (row-tiled, 64 lanes)
            pl.BlockSpec((tile_r, 4), lambda i: (i, 0)),        # proposal boxes
            pl.BlockSpec((D_RAW, H_PAD), lambda i: (0, 0)),     # w1 (resident)
            pl.BlockSpec((1, H_PAD), lambda i: (0, 0)),         # b1
            pl.BlockSpec((H_PAD, H_PAD), lambda i: (0, 0)),     # w2
            pl.BlockSpec((1, H_PAD), lambda i: (0, 0)),         # b2
            pl.BlockSpec((H_PAD, FUSED_W), lambda i: (0, 0)),   # fused predictor W
            pl.BlockSpec((1, FUSED_W), lambda i: (0, 0)),       # fused predictor b
        ],
        out_specs=pl.BlockSpec((tile_r, OUT_W), lambda i: (i, 0)),
        compiler_params=pltpu.CompilerParams(
            dimension_semantics=("parallel",)),
    )(x_in, boxes_in, w1, b1, w2, b2, wo, bo)
    return out[:R_total]


# ----------------------------------------------------------------------------
# ROIPooler (ROIAlignV2-style, sampling_ratio=1) via separable interpolation
# matrices: pooled = A_y @ feat @ A_x^T per ROI  (dense matmuls, no gathers).
# TODO(synk): fuse this pooling (and its flatten) into the Pallas pipeline via a
#             per-ROI [P*P, H*W] interpolation matrix; kept in XLA for now.
# ----------------------------------------------------------------------------
def _interp_matrix(coords, size):
    # coords: [P] continuous sample positions along one axis -> [P, size]
    c = jnp.clip(coords, 0.0, float(size - 1))
    lo = jnp.floor(c)
    hi = jnp.minimum(lo + 1.0, float(size - 1))
    frac = c - lo
    idx = jnp.arange(size, dtype=jnp.float32)[None, :]
    m_lo = (idx == lo[:, None]).astype(jnp.float32)
    m_hi = (idx == hi[:, None]).astype(jnp.float32)
    return (1.0 - frac)[:, None] * m_lo + frac[:, None] * m_hi


def _roi_interp_matrices(box, H, W, P, scale):
    # aligned=True convention: continuous coords = box * scale - 0.5
    x1 = box[0] * scale - 0.5
    y1 = box[1] * scale - 0.5
    x2 = box[2] * scale - 0.5
    y2 = box[3] * scale - 0.5
    bin_w = (x2 - x1) / P
    bin_h = (y2 - y1) / P
    g = jnp.arange(P, dtype=jnp.float32) + 0.5
    px = x1 + g * bin_w
    py = y1 + g * bin_h
    return _interp_matrix(py, H), _interp_matrix(px, W)


def box_pooler(feature, proposal_boxes):
    """feature: [N, C, H, W]; proposal_boxes: [N, R, 4] -> [N*R, C, P, P]."""
    # TODO(synk): ROIAlignV2's adaptive sampling_ratio (ceil of bin size) and its
    # zero-outside-the-map border rule are not reproduced (1 sample/bin, clamp).
    N, C, H, W = feature.shape
    P = POOLER_RESOLUTION
    scale = 1.0 / FEATURE_STRIDE
    mk = functools.partial(_roi_interp_matrices, H=H, W=W, P=P, scale=scale)
    Ay, Ax = jax.vmap(jax.vmap(mk))(proposal_boxes)        # [N,R,P,H], [N,R,P,W]
    t = jnp.einsum('nrph,nchw->nrcpw', Ay, feature)
    pooled = jnp.einsum('nrcpw,nrqw->nrcpq', t, Ax)        # [N,R,C,P,P]
    return pooled.reshape(N * proposal_boxes.shape[1], C, P, P)


# ----------------------------------------------------------------------------
# StandardROIHeads forward (inference path: training=False, rbg=False)
# ----------------------------------------------------------------------------
def standard_roi_heads_forward(features, proposal_boxes, kernel_params):
    """
    features:       dict {"p2": [N, C, H, W]}   (NCHW, like PyTorch)
    proposal_boxes: [N, R, 4]
    returns dict: pred boxes [N, R, K, 4], scores [N, R, K], keep [N, R, K].
    """
    feats = features["p2"]
    N, R = proposal_boxes.shape[0], proposal_boxes.shape[1]
    K = NUM_CLASSES

    # 1) box_pooler (matmul-based ROIAlign) + flatten (C-major, like torch)
    pooled = box_pooler(feats, proposal_boxes)                  # [N*R, C, P, P]
    x = pooled.reshape(N * R, -1)                               # [N*R, D_RAW]
    boxes = proposal_boxes.reshape(N * R, 4)

    # 2-4) box_head + fused box_predictor + softmax + apply_deltas (Pallas)
    out = roi_box_kernel_call(x, boxes, kernel_params)          # [N*R, 40]

    scores = out[:, 0:K]
    pred_boxes = jnp.stack(
        [out[:, K:2 * K], out[:, 2 * K:3 * K],
         out[:, 3 * K:4 * K], out[:, 4 * K:5 * K]], axis=-1)    # [N*R, K, 4]
    keep = scores > SCORE_THRESH_TEST
    # TODO(synk): per-class NMS + top-k has no clean Pallas equivalent.

    return {
        "pred_boxes": pred_boxes.reshape(N, R, K, 4),
        "scores": scores.reshape(N, R, K),
        "keep": keep.reshape(N, R, K),
    }


# ----------------------------------------------------------------------------
# Parameter init (raw, PyTorch-like shapes) + packing into kernel layout
# ----------------------------------------------------------------------------
def init_params(key):
    d_in = D_RAW
    k1, k2, k3, k4 = jax.random.split(key, 4)
    w1 = jax.random.normal(k1, (d_in, FC_DIM), jnp.float32) / math.sqrt(d_in)
    b1 = jnp.zeros((FC_DIM,), jnp.float32)
    w2 = jax.random.normal(k2, (FC_DIM, FC_DIM), jnp.float32) / math.sqrt(FC_DIM)
    b2 = jnp.zeros((FC_DIM,), jnp.float32)
    wc = jax.random.normal(k3, (FC_DIM, NUM_CLASSES + 1), jnp.float32) * 0.01
    bc = jnp.zeros((NUM_CLASSES + 1,), jnp.float32)
    wr = jax.random.normal(k4, (FC_DIM, 4 * NUM_CLASSES), jnp.float32) * 0.001
    br = jnp.zeros((4 * NUM_CLASSES,), jnp.float32)
    return (w1, b1, w2, b2, wc, bc, wr, br)


def pack_params(raw):
    """Pad to lane-aligned shapes, fuse cls+bbox heads into one 64-lane weight
    (bbox columns permuted to dx|dy|dw|dh blocks), cast weights to bf16."""
    w1, b1, w2, b2, wc, bc, wr, br = raw
    K = NUM_CLASSES

    w1p = jnp.zeros((D_RAW, H_PAD), jnp.float32).at[:, :FC_DIM].set(w1)
    b1p = jnp.zeros((1, H_PAD), jnp.float32).at[0, :FC_DIM].set(b1)
    w2p = jnp.zeros((H_PAD, H_PAD), jnp.float32).at[:FC_DIM, :FC_DIM].set(w2)
    b2p = jnp.zeros((1, H_PAD), jnp.float32).at[0, :FC_DIM].set(b2)

    wo = jnp.zeros((H_PAD, FUSED_W), jnp.float32).at[:FC_DIM, 0:K + 1].set(wc)
    bo = jnp.zeros((1, FUSED_W), jnp.float32).at[0, 0:K + 1].set(bc)
    for off, col in ((C_DX, 0), (C_DY, 1), (C_DW, 2), (C_DH, 3)):
        wo = wo.at[:FC_DIM, off:off + K].set(wr[:, col::4])
        bo = bo.at[0, off:off + K].set(br[col::4])

    return (w1p.astype(jnp.bfloat16), b1p,
            w2p.astype(jnp.bfloat16), b2p,
            wo.astype(jnp.bfloat16), bo)


if __name__ == "__main__":
    key = jax.random.PRNGKey(0)
    k_feat, k_box, k_param = jax.random.split(key, 3)

    N, C, H, W = 2, IN_CHANNELS, 16, 16
    R = 8  # proposals per image

    features = {"p2": jax.random.normal(k_feat, (N, C, H, W), jnp.float32)}

    # deterministic proposal boxes (x1,y1,x2,y2) inside the 64x64 image
    c = jax.random.uniform(k_box, (N, R, 2), minval=8.0, maxval=56.0)
    wh = jax.random.uniform(jax.random.fold_in(k_box, 1), (N, R, 2),
                            minval=4.0, maxval=16.0)
    proposal_boxes = jnp.concatenate(
        [jnp.clip(c - wh, 0.0, 64.0), jnp.clip(c + wh, 0.0, 64.0)], axis=-1)

    params = pack_params(init_params(k_param))

    fwd = jax.jit(standard_roi_heads_forward)
    out = fwd(features, proposal_boxes, params)
    jax.block_until_ready(out["scores"])
    jax.block_until_ready(out["pred_boxes"])

    assert out["scores"].shape == (N, R, NUM_CLASSES)
    assert out["pred_boxes"].shape == (N, R, NUM_CLASSES, 4)
    assert out["keep"].shape == (N, R, NUM_CLASSES)
    assert bool(jnp.all(jnp.isfinite(out["scores"])))
    assert bool(jnp.all(jnp.isfinite(out["pred_boxes"])))
    print("KERNEL_OK")
</pallas_src>

<mosaic_0001>
module attributes {stable_mosaic.version = 11 : i64} {
  func.func @_roi_box_kernel(%arg0: i32, %arg1: memref<16x64xbf16, #tpu.memory_space<vmem>>, %arg2: memref<16x4xf32, #tpu.memory_space<vmem>>, %arg3: memref<64x128xbf16, #tpu.memory_space<vmem>>, %arg4: memref<1x128xf32, #tpu.memory_space<vmem>>, %arg5: memref<128x128xbf16, #tpu.memory_space<vmem>>, %arg6: memref<1x128xf32, #tpu.memory_space<vmem>>, %arg7: memref<128x64xbf16, #tpu.memory_space<vmem>>, %arg8: memref<1x64xf32, #tpu.memory_space<vmem>>, %arg9: memref<16x40xf32, #tpu.memory_space<vmem>>) attributes {dimension_semantics = [#tpu.dimension_semantics<parallel>], iteration_bounds = array<i64: 2>, scalar_prefetch = 0 : i64, scratch_operands = 0 : i64, tpu.core_type = #tpu.core_type<tc>, window_params = [{transform_indices = @transform_0, window_bounds = array<i64: 16, 64>}, {transform_indices = @transform_1, window_bounds = array<i64: 16, 4>}, {pipeline_mode = #tpu.pipeline_mode<synchronous>, transform_indices = @transform_2, window_bounds = array<i64: 64, 128>}, {pipeline_mode = #tpu.pipeline_mode<synchronous>, transform_indices = @transform_3, window_bounds = array<i64: 1, 128>}, {pipeline_mode = #tpu.pipeline_mode<synchronous>, transform_indices = @transform_4, window_bounds = array<i64: 128, 128>}, {pipeline_mode = #tpu.pipeline_mode<synchronous>, transform_indices = @transform_5, window_bounds = array<i64: 1, 128>}, {pipeline_mode = #tpu.pipeline_mode<synchronous>, transform_indices = @transform_6, window_bounds = array<i64: 128, 64>}, {pipeline_mode = #tpu.pipeline_mode<synchronous>, transform_indices = @transform_7, window_bounds = array<i64: 1, 64>}, {transform_indices = @transform_8, window_bounds = array<i64: 16, 40>}]} {
    %c0 = arith.constant 0 : index
    %c0_0 = arith.constant 0 : index
    %0 = vector.load %arg1[%c0, %c0_0] : memref<16x64xbf16, #tpu.memory_space<vmem>>, vector<16x64xbf16>
    %c0_1 = arith.constant 0 : index
    %c0_2 = arith.constant 0 : index
    %1 = vector.load %arg3[%c0_1, %c0_2] : memref<64x128xbf16, #tpu.memory_space<vmem>>, vector<64x128xbf16>
    %cst = arith.constant dense<0.000000e+00> : vector<16x128xf32>
    %2 = tpu.matmul %0, %1, %cst {dimension_numbers = #tpu.dot_dimension_numbers<[1], [0], [0], [1], [0, 0, 1, 1], [], []>} : vector<16x64xbf16>, vector<64x128xbf16>, vector<16x128xf32> -> vector<16x128xf32>
    %c0_3 = arith.constant 0 : index
    %c0_4 = arith.constant 0 : index
    %3 = vector.load %arg4[%c0_3, %c0_4] : memref<1x128xf32, #tpu.memory_space<vmem>>, vector<1x128xf32>
    %4 = vector.broadcast %3 : vector<1x128xf32> to vector<16x128xf32>
    %5 = arith.addf %2, %4 : vector<16x128xf32>
    %cst_5 = arith.constant 0.000000e+00 : f32
    %6 = vector.broadcast %cst_5 : f32 to vector<16x128xf32>
    %7 = arith.maximumf %5, %6 : vector<16x128xf32>
    %8 = arith.truncf %7 : vector<16x128xf32> to vector<16x128xbf16>
    %c0_6 = arith.constant 0 : index
    %c0_7 = arith.constant 0 : index
    %9 = vector.load %arg5[%c0_6, %c0_7] : memref<128x128xbf16, #tpu.memory_space<vmem>>, vector<128x128xbf16>
    %cst_8 = arith.constant dense<0.000000e+00> : vector<16x128xf32>
    %10 = tpu.matmul %8, %9, %cst_8 {dimension_numbers = #tpu.dot_dimension_numbers<[1], [0], [0], [1], [0, 0, 1, 1], [], []>} : vector<16x128xbf16>, vector<128x128xbf16>, vector<16x128xf32> -> vector<16x128xf32>
    %c0_9 = arith.constant 0 : index
    %c0_10 = arith.constant 0 : index
    %11 = vector.load %arg6[%c0_9, %c0_10] : memref<1x128xf32, #tpu.memory_space<vmem>>, vector<1x128xf32>
    %12 = vector.broadcast %11 : vector<1x128xf32> to vector<16x128xf32>
    %13 = arith.addf %10, %12 : vector<16x128xf32>
    %cst_11 = arith.constant 0.000000e+00 : f32
    %14 = vector.broadcast %cst_11 : f32 to vector<16x128xf32>
    %15 = arith.maximumf %13, %14 : vector<16x128xf32>
    %16 = arith.truncf %15 : vector<16x128xf32> to vector<16x128xbf16>
    %c0_12 = arith.constant 0 : index
    %c0_13 = arith.constant 0 : index
    %17 = vector.load %arg7[%c0_12, %c0_13] : memref<128x64xbf16, #tpu.memory_space<vmem>>, vector<128x64xbf16>
    %cst_14 = arith.constant dense<0.000000e+00> : vector<16x64xf32>
    %18 = tpu.matmul %16, %17, %cst_14 {dimension_numbers = #tpu.dot_dimension_numbers<[1], [0], [0], [1], [0, 0, 1, 1], [], []>} : vector<16x128xbf16>, vector<128x64xbf16>, vector<16x64xf32> -> vector<16x64xf32>
    %c0_15 = arith.constant 0 : index
    %c0_16 = arith.constant 0 : index
    %19 = vector.load %arg8[%c0_15, %c0_16] : memref<1x64xf32, #tpu.memory_space<vmem>>, vector<1x64xf32>
    %20 = vector.broadcast %19 : vector<1x64xf32> to vector<16x64xf32>
    %21 = arith.addf %18, %20 : vector<16x64xf32>
    %22 = vector.extract_strided_slice %21 {offsets = [0, 0], sizes = [16, 9], strides = [1, 1]} : vector<16x64xf32> to vector<16x9xf32>
    %cst_17 = arith.constant dense<0xFF800000> : vector<16xf32>
    %23 = vector.multi_reduction <maximumf>, %22, %cst_17 [1] : vector<16x9xf32> to vector<16xf32>
    %24 = vector.shape_cast %23 : vector<16xf32> to vector<16x1xf32>
    %25 = vector.broadcast %24 : vector<16x1xf32> to vector<16x9xf32>
    %26 = arith.subf %22, %25 : vector<16x9xf32>
    %27 = math.exp %26 : vector<16x9xf32>
    %cst_18 = arith.constant dense<0.000000e+00> : vector<16xf32>
    %28 = vector.multi_reduction <add>, %27, %cst_18 [1] : vector<16x9xf32> to vector<16xf32>
    %29 = vector.shape_cast %28 : vector<16xf32> to vector<16x1xf32>
    %30 = tpu.reciprocal %29 : vector<16x1xf32> -> vector<16x1xf32>
    %31 = vector.broadcast %30 : vector<16x1xf32> to vector<16x9xf32>
    %32 = arith.mulf %27, %31 : vector<16x9xf32>
    %33 = vector.extract_strided_slice %32 {offsets = [0, 0], sizes = [16, 8], strides = [1, 1]} : vector<16x9xf32> to vector<16x8xf32>
    %c0_19 = arith.constant 0 : index
    %c0_20 = arith.constant 0 : index
    %34 = vector.load %arg2[%c0_19, %c0_20] : memref<16x4xf32, #tpu.memory_space<vmem>>, vector<16x4xf32>
    %35 = vector.extract_strided_slice %34 {offsets = [0, 2], sizes = [16, 1], strides = [1, 1]} : vector<16x4xf32> to vector<16x1xf32>
    %36 = vector.extract_strided_slice %34 {offsets = [0, 0], sizes = [16, 1], strides = [1, 1]} : vector<16x4xf32> to vector<16x1xf32>
    %37 = arith.subf %35, %36 : vector<16x1xf32>
    %38 = vector.extract_strided_slice %34 {offsets = [0, 3], sizes = [16, 1], strides = [1, 1]} : vector<16x4xf32> to vector<16x1xf32>
    %39 = vector.extract_strided_slice %34 {offsets = [0, 1], sizes = [16, 1], strides = [1, 1]} : vector<16x4xf32> to vector<16x1xf32>
    %40 = arith.subf %38, %39 : vector<16x1xf32>
    %41 = vector.extract_strided_slice %34 {offsets = [0, 0], sizes = [16, 1], strides = [1, 1]} : vector<16x4xf32> to vector<16x1xf32>
    %cst_21 = arith.constant 5.000000e-01 : f32
    %42 = vector.broadcast %cst_21 : f32 to vector<16x1xf32>
    %43 = arith.mulf %42, %37 : vector<16x1xf32>
    %44 = arith.addf %41, %43 : vector<16x1xf32>
    %45 = vector.extract_strided_slice %34 {offsets = [0, 1], sizes = [16, 1], strides = [1, 1]} : vector<16x4xf32> to vector<16x1xf32>
    %cst_22 = arith.constant 5.000000e-01 : f32
    %46 = vector.broadcast %cst_22 : f32 to vector<16x1xf32>
    %47 = arith.mulf %46, %40 : vector<16x1xf32>
    %48 = arith.addf %45, %47 : vector<16x1xf32>
    %49 = vector.extract_strided_slice %21 {offsets = [0, 16], sizes = [16, 8], strides = [1, 1]} : vector<16x64xf32> to vector<16x8xf32>
    %cst_23 = arith.constant 1.000000e-01 : f32
    %50 = vector.broadcast %cst_23 : f32 to vector<16x8xf32>
    %51 = arith.mulf %49, %50 : vector<16x8xf32>
    %52 = vector.extract_strided_slice %21 {offsets = [0, 24], sizes = [16, 8], strides = [1, 1]} : vector<16x64xf32> to vector<16x8xf32>
    %cst_24 = arith.constant 1.000000e-01 : f32
    %53 = vector.broadcast %cst_24 : f32 to vector<16x8xf32>
    %54 = arith.mulf %52, %53 : vector<16x8xf32>
    %55 = vector.extract_strided_slice %21 {offsets = [0, 32], sizes = [16, 8], strides = [1, 1]} : vector<16x64xf32> to vector<16x8xf32>
    %cst_25 = arith.constant 2.000000e-01 : f32
    %56 = vector.broadcast %cst_25 : f32 to vector<16x8xf32>
    %57 = arith.mulf %55, %56 : vector<16x8xf32>
    %cst_26 = arith.constant 4.13516665 : f32
    %58 = vector.broadcast %cst_26 : f32 to vector<16x8xf32>
    %59 = arith.minimumf %57, %58 : vector<16x8xf32>
    %60 = vector.extract_strided_slice %21 {offsets = [0, 40], sizes = [16, 8], strides = [1, 1]} : vector<16x64xf32> to vector<16x8xf32>
    %cst_27 = arith.constant 2.000000e-01 : f32
    %61 = vector.broadcast %cst_27 : f32 to vector<16x8xf32>
    %62 = arith.mulf %60, %61 : vector<16x8xf32>
    %cst_28 = arith.constant 4.13516665 : f32
    %63 = vector.broadcast %cst_28 : f32 to vector<16x8xf32>
    %64 = arith.minimumf %62, %63 : vector<16x8xf32>
    %65 = vector.broadcast %37 : vector<16x1xf32> to vector<16x8xf32>
    %66 = arith.mulf %51, %65 : vector<16x8xf32>
    %67 = vector.broadcast %44 : vector<16x1xf32> to vector<16x8xf32>
    %68 = arith.addf %66, %67 : vector<16x8xf32>
    %69 = vector.broadcast %40 : vector<16x1xf32> to vector<16x8xf32>
    %70 = arith.mulf %54, %69 : vector<16x8xf32>
    %71 = vector.broadcast %48 : vector<16x1xf32> to vector<16x8xf32>
    %72 = arith.addf %70, %71 : vector<16x8xf32>
    %73 = math.exp %59 : vector<16x8xf32>
    %74 = vector.broadcast %37 : vector<16x1xf32> to vector<16x8xf32>
    %75 = arith.mulf %73, %74 : vector<16x8xf32>
    %76 = math.exp %64 : vector<16x8xf32>
    %77 = vector.broadcast %40 : vector<16x1xf32> to vector<16x8xf32>
    %78 = arith.mulf %76, %77 : vector<16x8xf32>
    %cst_29 = arith.constant 5.000000e-01 : f32
    %79 = vector.broadcast %cst_29 : f32 to vector<16x8xf32>
    %80 = arith.mulf %79, %75 : vector<16x8xf32>
    %81 = arith.subf %68, %80 : vector<16x8xf32>
    %cst_30 = arith.constant 0.000000e+00 : f32
    %cst_31 = arith.constant 6.400000e+01 : f32
    %82 = vector.broadcast %cst_30 : f32 to vector<16x8xf32>
    %83 = arith.maximumf %82, %81 : vector<16x8xf32>
    %84 = vector.broadcast %cst_31 : f32 to vector<16x8xf32>
    %85 = arith.minimumf %84, %83 : vector<16x8xf32>
    %cst_32 = arith.constant 5.000000e-01 : f32
    %86 = vector.broadcast %cst_32 : f32 to vector<16x8xf32>
    %87 = arith.mulf %86, %78 : vector<16x8xf32>
    %88 = arith.subf %72, %87 : vector<16x8xf32>
    %cst_33 = arith.constant 0.000000e+00 : f32
    %cst_34 = arith.constant 6.400000e+01 : f32
    %89 = vector.broadcast %cst_33 : f32 to vector<16x8xf32>
    %90 = arith.maximumf %89, %88 : vector<16x8xf32>
    %91 = vector.broadcast %cst_34 : f32 to vector<16x8xf32>
    %92 = arith.minimumf %91, %90 : vector<16x8xf32>
    %cst_35 = arith.constant 5.000000e-01 : f32
    %93 = vector.broadcast %cst_35 : f32 to vector<16x8xf32>
    %94 = arith.mulf %93, %75 : vector<16x8xf32>
    %95 = arith.addf %68, %94 : vector<16x8xf32>
    %cst_36 = arith.constant 0.000000e+00 : f32
    %cst_37 = arith.constant 6.400000e+01 : f32
    %96 = vector.broadcast %cst_36 : f32 to vector<16x8xf32>
    %97 = arith.maximumf %96, %95 : vector<16x8xf32>
    %98 = vector.broadcast %cst_37 : f32 to vector<16x8xf32>
    %99 = arith.minimumf %98, %97 : vector<16x8xf32>
    %cst_38 = arith.constant 5.000000e-01 : f32
    %100 = vector.broadcast %cst_38 : f32 to vector<16x8xf32>
    %101 = arith.mulf %100, %78 : vector<16x8xf32>
    %102 = arith.addf %72, %101 : vector<16x8xf32>
    %cst_39 = arith.constant 0.000000e+00 : f32
    %cst_40 = arith.constant 6.400000e+01 : f32
    %103 = vector.broadcast %cst_39 : f32 to vector<16x8xf32>
    %104 = arith.maximumf %103, %102 : vector<16x8xf32>
    %105 = vector.broadcast %cst_40 : f32 to vector<16x8xf32>
    %106 = arith.minimumf %105, %104 : vector<16x8xf32>
    %107 = tpu.concatenate %33, %85, %92, %99, %106 in 1 : vector<16x8xf32>, vector<16x8xf32>, vector<16x8xf32>, vector<16x8xf32>, vector<16x8xf32> -> vector<16x40xf32>
    %c0_41 = arith.constant 0 : index
    %c0_42 = arith.constant 0 : index
    %108 = vector.load %arg9[%c0_41, %c0_42] : memref<16x40xf32, #tpu.memory_space<vmem>>, vector<16x40xf32>
    tpu.vector_store %arg9[%c0_41, %c0_42], %107 {strides = array<i32>} : memref<16x40xf32, #tpu.memory_space<vmem>>, vector<16x40xf32>,
    return
  }
  func.func @transform_0(%arg0: i32) -> (i32, i32) {
    %c0_i32 = arith.constant 0 : i32
    %c0_i32_0 = arith.constant 0 : i32
    return %arg0, %c0_i32 : i32, i32
  }
  func.func @transform_1(%arg0: i32) -> (i32, i32) {
    %c0_i32 = arith.constant 0 : i32
    %c0_i32_0 = arith.constant 0 : i32
    return %arg0, %c0_i32 : i32, i32
  }
  func.func @transform_2(%arg0: i32) -> (i32, i32) {
    %c0_i32 = arith.constant 0 : i32
    %c0_i32_0 = arith.constant 0 : i32
    %c0_i32_1 = arith.constant 0 : i32
    return %c0_i32, %c0_i32_0 : i32, i32
  }
  func.func @transform_3(%arg0: i32) -> (i32, i32) {
    %c0_i32 = arith.constant 0 : i32
    %c0_i32_0 = arith.constant 0 : i32
    %c0_i32_1 = arith.constant 0 : i32
    return %c0_i32, %c0_i32_0 : i32, i32
  }
  func.func @transform_4(%arg0: i32) -> (i32, i32) {
    %c0_i32 = arith.constant 0 : i32
    %c0_i32_0 = arith.constant 0 : i32
    %c0_i32_1 = arith.constant 0 : i32
    return %c0_i32, %c0_i32_0 : i32, i32
  }
  func.func @transform_5(%arg0: i32) -> (i32, i32) {
    %c0_i32 = arith.constant 0 : i32
    %c0_i32_0 = arith.constant 0 : i32
    %c0_i32_1 = arith.constant 0 : i32
    return %c0_i32, %c0_i32_0 : i32, i32
  }
  func.func @transform_6(%arg0: i32) -> (i32, i32) {
    %c0_i32 = arith.constant 0 : i32
    %c0_i32_0 = arith.constant 0 : i32
    %c0_i32_1 = arith.constant 0 : i32
    return %c0_i32, %c0_i32_0 : i32, i32
  }
  func.func @transform_7(%arg0: i32) -> (i32, i32) {
    %c0_i32 = arith.constant 0 : i32
    %c0_i32_0 = arith.constant 0 : i32
    %c0_i32_1 = arith.constant 0 : i32
    return %c0_i32, %c0_i32_0 : i32, i32
  }
  func.func @transform_8(%arg0: i32) -> (i32, i32) {
    %c0_i32 = arith.constant 0 : i32
    %c0_i32_0 = arith.constant 0 : i32
    return %arg0, %c0_i32 : i32, i32
  }
}

</mosaic_0001>

<llo_original>
// kernel: standard_roi_heads_forward.1
$region0: #{standard_roi_heads_forward.1}
  #allocation0 [shape = 'u32[]', space=smem, size = 0x4, offset = 0x4, fixed_abs, tag = 'smem constant byte address 0x4 - core index']
  #allocation1 [shape = 'u32[144,128]{1,0:T(1,128)}', space=vmem, size = 0x12000, scoped, tag = 'internal scratch']
  %s0 = inlined_call_operand.vmem [shape: bf16[32,64], index: 0, kind: input, shape index: {}]
  %s1 = inlined_call_operand.vmem [shape: f32[32,4], index: 1, kind: input, shape index: {}]
  %s2 = inlined_call_operand.vmem [shape: bf16[64,128], index: 2, kind: input, shape index: {}]
  %s3 = inlined_call_operand.vmem [shape: f32[1,128], index: 3, kind: input, shape index: {}]
  %s4 = inlined_call_operand.vmem [shape: bf16[128,128], index: 4, kind: input, shape index: {}]
  %s5 = inlined_call_operand.vmem [shape: f32[1,128], index: 5, kind: input, shape index: {}]
  %s6 = inlined_call_operand.vmem [shape: bf16[128,64], index: 6, kind: input, shape index: {}]
  %s7 = inlined_call_operand.vmem [shape: f32[1,64], index: 7, kind: input, shape index: {}]
  %s8 = inlined_call_operand.vmem [shape: f32[32,40], index: 8, kind: output, shape index: {}]
  %s9 = sld [smem:[#allocation0]]
  $region65: #{standard_roi_heads_forward.1} parent=0
    _
  %s11 = ssub.s32 1, %s9
  %s12 = scalar_select 0, %s11, %s9
  loop: start=0, step=1, limit=4
  $region2: #{standard_roi_heads_forward.1} parent=0 // loop_pre_header
    _
  $region3: #{standard_roi_heads_forward.1} parent=0 // loop_header
    %s14 = sphi 0, %s18
    %p15 = scmp.ge.s32.totalorder %s14, 4
    %s24 = sphi 0, %s26
    %s27 = sphi 0, %s24
    %s28 = sphi 0, %s27
    %s44 = sphi 0, %s28
    %s50 = sphi 0, %s52
    %s53 = sphi 0, %s50
    %s54 = sphi 0, %s53
    %s70 = sphi 0, %s54
    %s74 = sphi 0, %s74
    %s76 = sphi 0, %s74
    %s77 = sphi 0, %s76
    %s91 = sphi 0, %s77
    %s95 = sphi 0, %s95
    %s97 = sphi 0, %s95
    %s98 = sphi 0, %s97
    %s112 = sphi 0, %s98
    %s116 = sphi 0, %s116
    %s118 = sphi 0, %s116
    %s119 = sphi 0, %s118
    %s133 = sphi 0, %s119
    %s137 = sphi 0, %s137
    %s139 = sphi 0, %s137
    %s140 = sphi 0, %s139
    %s154 = sphi 0, %s140
    %s158 = sphi 0, %s158
    %s160 = sphi 0, %s158
    %s161 = sphi 0, %s160
    %s175 = sphi 0, %s161
    %s179 = sphi 0, %s179
    %s181 = sphi 0, %s179
    %s182 = sphi 0, %s181
    %s196 = sphi 0, %s182
    %s202 = sphi 0, %s204
    %s205 = sphi 0, %s202
    %s206 = sphi 0, %s205
    %s222 = sphi 0, %s206
  $region4: #{standard_roi_heads_forward.1} parent=0 // loop_header_branch
    %17 = sbr.rel (%p15) target = $region8
  $region5: #{standard_roi_heads_forward.1} parent=0 // loop_body
    %s19 = ssub.s32 %s14, 1
    %s20 = ssub.s32 %s14, 2
    %s21 = sadd.s32 %s14, 1
    %s22 = ssub.s32 %s14, %s21
    %p23 = scmp.eq.s32.totalorder %s22, 0
    %s25 = sadd.s32 %s24, 1
    %s26 = scalar_select %p23, %s24, %s25
    %p29 = pneg %p23
    %p30 = scmp.eq.s32.totalorder %s14, 1
    %p31 = por %p29, %p30
    %p32 = scmp.ne.s32.totalorder %s24, %s27
    %p33 = scmp.eq.s32.totalorder %s14, 0
    %p34 = por %p32, %p33
    %p35 = scmp.ne.s32.totalorder %s24, %s27
    %p36 = scmp.eq.s32.totalorder %s19, 1
    %p37 = por %p35, %p36
    %p38 = scmp.ne.s32.totalorder %s27, %s28
    %p39 = scmp.eq.s32.totalorder %s19, 0
    %p40 = por %p38, %p39
    %p41 = scmp.ne.s32.totalorder %s27, %s28
    %p42 = scmp.eq.s32.totalorder %s20, 1
    %p43 = por %p41, %p42
    %p45 = scmp.ne.s32.totalorder %s28, %s44
    %p46 = scmp.eq.s32.totalorder %s20, 0
    %p47 = por %p45, %p46
    %s48 = ssub.s32 %s14, %s21
    %p49 = scmp.eq.s32.totalorder %s48, 0
    %s51 = sadd.s32 %s50, 1
    %s52 = scalar_select %p49, %s50, %s51
    %p55 = pneg %p49
    %p56 = scmp.eq.s32.totalorder %s14, 1
    %p57 = por %p55, %p56
    %p58 = scmp.ne.s32.totalorder %s50, %s53
    %p59 = scmp.eq.s32.totalorder %s14, 0
    %p60 = por %p58, %p59
    %p61 = scmp.ne.s32.totalorder %s50, %s53
    %p62 = scmp.eq.s32.totalorder %s19, 1
    %p63 = por %p61, %p62
    %p64 = scmp.ne.s32.totalorder %s53, %s54
    %p65 = scmp.eq.s32.totalorder %s19, 0
    %p66 = por %p64, %p65
    %p67 = scmp.ne.s32.totalorder %s53, %s54
    %p68 = scmp.eq.s32.totalorder %s20, 1
    %p69 = por %p67, %p68
    %p71 = scmp.ne.s32.totalorder %s54, %s70
    %p72 = scmp.eq.s32.totalorder %s20, 0
    %p73 = por %p71, %p72
    %s75 = sadd.s32 %s74, 1
    %p78 = scmp.eq.s32.totalorder %s14, 1
    %p79 = scmp.ne.s32.totalorder %s74, %s76
    %p80 = scmp.eq.s32.totalorder %s14, 0
    %p81 = por %p79, %p80
    %p82 = scmp.ne.s32.totalorder %s74, %s76
    %p83 = scmp.eq.s32.totalorder %s19, 1
    %p84 = por %p82, %p83
    %p85 = scmp.ne.s32.totalorder %s76, %s77
    %p86 = scmp.eq.s32.totalorder %s19, 0
    %p87 = por %p85, %p86
    %p88 = scmp.ne.s32.totalorder %s76, %s77
    %p89 = scmp.eq.s32.totalorder %s20, 1
    %p90 = por %p88, %p89
    %p92 = scmp.ne.s32.totalorder %s77, %s91
    %p93 = scmp.eq.s32.totalorder %s20, 0
    %p94 = por %p92, %p93
    %s96 = sadd.s32 %s95, 1
    %p99 = scmp.eq.s32.totalorder %s14, 1
    %p100 = scmp.ne.s32.totalorder %s95, %s97
    %p101 = scmp.eq.s32.totalorder %s14, 0
    %p102 = por %p100, %p101
    %p103 = scmp.ne.s32.totalorder %s95, %s97
    %p104 = scmp.eq.s32.totalorder %s19, 1
    %p105 = por %p103, %p104
    %p106 = scmp.ne.s32.totalorder %s97, %s98
    %p107 = scmp.eq.s32.totalorder %s19, 0
    %p108 = por %p106, %p107
    %p109 = scmp.ne.s32.totalorder %s97, %s98
    %p110 = scmp.eq.s32.totalorder %s20, 1
    %p111 = por %p109, %p110
    %p113 = scmp.ne.s32.totalorder %s98, %s112
    %p114 = scmp.eq.s32.totalorder %s20, 0
    %p115 = por %p113, %p114
    %s117 = sadd.s32 %s116, 1
    %p120 = scmp.eq.s32.totalorder %s14, 1
    %p121 = scmp.ne.s32.totalorder %s116, %s118
    %p122 = scmp.eq.s32.totalorder %s14, 0
    %p123 = por %p121, %p122
    %p124 = scmp.ne.s32.totalorder %s116, %s118
    %p125 = scmp.eq.s32.totalorder %s19, 1
    %p126 = por %p124, %p125
    %p127 = scmp.ne.s32.totalorder %s118, %s119
    %p128 = scmp.eq.s32.totalorder %s19, 0
    %p129 = por %p127, %p128
    %p130 = scmp.ne.s32.totalorder %s118, %s119
    %p131 = scmp.eq.s32.totalorder %s20, 1
    %p132 = por %p130, %p131
    %p134 = scmp.ne.s32.totalorder %s119, %s133
    %p135 = scmp.eq.s32.totalorder %s20, 0
    %p136 = por %p134, %p135
    %s138 = sadd.s32 %s137, 1
    %p141 = scmp.eq.s32.totalorder %s14, 1
    %p142 = scmp.ne.s32.totalorder %s137, %s139
    %p143 = scmp.eq.s32.totalorder %s14, 0
    %p144 = por %p142, %p143
    %p145 = scmp.ne.s32.totalorder %s137, %s139
    %p146 = scmp.eq.s32.totalorder %s19, 1
    %p147 = por %p145, %p146
    %p148 = scmp.ne.s32.totalorder %s139, %s140
    %p149 = scmp.eq.s32.totalorder %s19, 0
    %p150 = por %p148, %p149
    %p151 = scmp.ne.s32.totalorder %s139, %s140
    %p152 = scmp.eq.s32.totalorder %s20, 1
    %p153 = por %p151, %p152
    %p155 = scmp.ne.s32.totalorder %s140, %s154
    %p156 = scmp.eq.s32.totalorder %s20, 0
    %p157 = por %p155, %p156
    %s159 = sadd.s32 %s158, 1
    %p162 = scmp.eq.s32.totalorder %s14, 1
    %p163 = scmp.ne.s32.totalorder %s158, %s160
    %p164 = scmp.eq.s32.totalorder %s14, 0
    %p165 = por %p163, %p164
    %p166 = scmp.ne.s32.totalorder %s158, %s160
    %p167 = scmp.eq.s32.totalorder %s19, 1
    %p168 = por %p166, %p167
    %p169 = scmp.ne.s32.totalorder %s160, %s161
    %p170 = scmp.eq.s32.totalorder %s19, 0
    %p171 = por %p169, %p170
    %p172 = scmp.ne.s32.totalorder %s160, %s161
    %p173 = scmp.eq.s32.totalorder %s20, 1
    %p174 = por %p172, %p173
    %p176 = scmp.ne.s32.totalorder %s161, %s175
    %p177 = scmp.eq.s32.totalorder %s20, 0
    %p178 = por %p176, %p177
    %s180 = sadd.s32 %s179, 1
    %p183 = scmp.eq.s32.totalorder %s14, 1
    %p184 = scmp.ne.s32.totalorder %s179, %s181
    %p185 = scmp.eq.s32.totalorder %s14, 0
    %p186 = por %p184, %p185
    %p187 = scmp.ne.s32.totalorder %s179, %s181
    %p188 = scmp.eq.s32.totalorder %s19, 1
    %p189 = por %p187, %p188
    %p190 = scmp.ne.s32.totalorder %s181, %s182
    %p191 = scmp.eq.s32.totalorder %s19, 0
    %p192 = por %p190, %p191
    %p193 = scmp.ne.s32.totalorder %s181, %s182
    %p194 = scmp.eq.s32.totalorder %s20, 1
    %p195 = por %p193, %p194
    %p197 = scmp.ne.s32.totalorder %s182, %s196
    %p198 = scmp.eq.s32.totalorder %s20, 0
    %p199 = por %p197, %p198
    %s200 = ssub.s32 %s14, %s21
    %p201 = scmp.eq.s32.totalorder %s200, 0
    %s203 = sadd.s32 %s202, 1
    %s204 = scalar_select %p201, %s202, %s203
    %p207 = pneg %p201
    %p208 = scmp.eq.s32.totalorder %s14, 1
    %p209 = por %p207, %p208
    %p210 = scmp.ne.s32.totalorder %s202, %s205
    %p211 = scmp.eq.s32.totalorder %s14, 0
    %p212 = por %p210, %p211
    %p213 = scmp.ne.s32.totalorder %s202, %s205
    %p214 = scmp.eq.s32.totalorder %s19, 1
    %p215 = por %p213, %p214
    %p216 = scmp.ne.s32.totalorder %s205, %s206
    %p217 = scmp.eq.s32.totalorder %s19, 0
    %p218 = por %p216, %p217
    %p219 = scmp.ne.s32.totalorder %s205, %s206
    %p220 = scmp.eq.s32.totalorder %s20, 1
    %p221 = por %p219, %p220
    %p223 = scmp.ne.s32.totalorder %s206, %s222
    %p224 = scmp.eq.s32.totalorder %s20, 0
    %p225 = por %p223, %p224
    %p226 = scmp.le.s32.totalorder 1, %s14
    %p227 = scmp.lt.s32.totalorder %s14, 3
    %p228 = pnand %p226, %p227
    %p229 = pneg %p228
    // Predicated region
    $region9: #{standard_roi_heads_forward.1} parent=5 // pred_check
      _
    $region10: #{standard_roi_heads_forward.1} parent=5 // pred_check_branch
      %231 = sbr.rel (%p228) target = $region12
    $region11: #{standard_roi_heads_forward.1} parent=5 // pred_region
      %s232 = ssub.s32 %s14, 1
      // Predicated region
      $region13: #{standard_roi_heads_forward.1} parent=11 // pred_check
        %p233 = pneg %p87
      $region14: #{standard_roi_heads_forward.1} parent=11 // pred_check_branch
        %235 = sbr.rel (%p233) target = $region16
      $region15: #{standard_roi_heads_forward.1} parent=11 // pred_region
        _
      $region16: #{standard_roi_heads_forward.1} parent=11 // pred_fallthru
        _
      // Predicated region
      $region17: #{standard_roi_heads_forward.1} parent=11 // pred_check
        %p236 = pneg %p108
      $region18: #{standard_roi_heads_forward.1} parent=11 // pred_check_branch
        %238 = sbr.rel (%p236) target = $region20
      $region19: #{standard_roi_heads_forward.1} parent=11 // pred_region
        _
      $region20: #{standard_roi_heads_forward.1} parent=11 // pred_fallthru
        _
      // Predicated region
      $region21: #{standard_roi_heads_forward.1} parent=11 // pred_check
        %p239 = pneg %p129
      $region22: #{standard_roi_heads_forward.1} parent=11 // pred_check_branch
        %241 = sbr.rel (%p239) target = $region24
      $region23: #{standard_roi_heads_forward.1} parent=11 // pred_region
        _
      $region24: #{standard_roi_heads_forward.1} parent=11 // pred_fallthru
        _
      // Predicated region
      $region25: #{standard_roi_heads_forward.1} parent=11 // pred_check
        %p242 = pneg %p150
      $region26: #{standard_roi_heads_forward.1} parent=11 // pred_check_branch
        %244 = sbr.rel (%p242) target = $region28
      $region27: #{standard_roi_heads_forward.1} parent=11 // pred_region
        _
      $region28: #{standard_roi_heads_forward.1} parent=11 // pred_fallthru
        _
      // Predicated region
      $region29: #{standard_roi_heads_forward.1} parent=11 // pred_check
        %p245 = pneg %p171
      $region30: #{standard_roi_heads_forward.1} parent=11 // pred_check_branch
        %247 = sbr.rel (%p245) target = $region32
      $region31: #{standard_roi_heads_forward.1} parent=11 // pred_region
        _
      $region32: #{standard_roi_heads_forward.1} parent=11 // pred_fallthru
        _
      // Predicated region
      $region33: #{standard_roi_heads_forward.1} parent=11 // pred_check
        %p248 = pneg %p192
      $region34: #{standard_roi_heads_forward.1} parent=11 // pred_check_branch
        %250 = sbr.rel (%p248) target = $region36
      $region35: #{standard_roi_heads_forward.1} parent=11 // pred_region
        _
      $region36: #{standard_roi_heads_forward.1} parent=11 // pred_fallthru
        _
    $region12: #{standard_roi_heads_forward.1} parent=5 // pred_fallthru
      _
    %p251 = scmp.lt.s32.totalorder %s14, 2
    // Predicated region
    $region37: #{standard_roi_heads_forward.1} parent=5 // pred_check
      %p252 = pneg %p251
    $region38: #{standard_roi_heads_forward.1} parent=5 // pred_check_branch
      %254 = sbr.rel (%p252) target = $region40
    $region39: #{standard_roi_heads_forward.1} parent=5 // pred_region
      // Predicated region
      $region41: #{standard_roi_heads_forward.1} parent=39 // pred_check
        %p255 = pneg %p34
      $region42: #{standard_roi_heads_forward.1} parent=39 // pred_check_branch
        %257 = sbr.rel (%p255) target = $region44
      $region43: #{standard_roi_heads_forward.1} parent=39 // pred_region
        %s258 = smul.u32 2, %s14
        %p259 = scmp.lt.s32.totalorder %s258, 3
        %s260 = scalar_select %p259, %s258, 3
        %s261 = smul.addr %s260, 4
        %s262 = scalar_lea.vmem %s0, %s261
        %s263 = smul.u32 2, %s14
      $region44: #{standard_roi_heads_forward.1} parent=39 // pred_fallthru
        _
      // Predicated region
      $region45: #{standard_roi_heads_forward.1} parent=39 // pred_check
        %p264 = pneg %p60
      $region46: #{standard_roi_heads_forward.1} parent=39 // pred_check_branch
        %266 = sbr.rel (%p264) target = $region48
      $region47: #{standard_roi_heads_forward.1} parent=39 // pred_region
        %s267 = smul.u32 2, %s14
        %p268 = scmp.lt.s32.totalorder %s267, 3
        %s269 = scalar_select %p268, %s267, 3
        %s270 = smul.addr %s269, 8
        %s271 = scalar_lea.vmem %s1, %s270
        %s272 = smul.u32 2, %s14
      $region48: #{standard_roi_heads_forward.1} parent=39 // pred_fallthru
        _
    $region40: #{standard_roi_heads_forward.1} parent=5 // pred_fallthru
      _
    %p273 = scmp.le.s32.totalorder 1, %s14
    %p274 = scmp.lt.s32.totalorder %s14, 3
    %p275 = pnand %p273, %p274
    %p276 = pneg %p275
    // Predicated region
    $region49: #{standard_roi_heads_forward.1} parent=5 // pred_check
      _
    $region50: #{standard_roi_heads_forward.1} parent=5 // pred_check_branch
      %278 = sbr.rel (%p275) target = $region52
    $region51: #{standard_roi_heads_forward.1} parent=5 // pred_region
      %s279 = ssub.s32 %s14, 1
      %s280 = smul.u32 2, %s19
      %p281 = scmp.lt.s32.totalorder %s280, 3
      %s282 = scalar_select %p281, %s280, 3
      %s283 = smul.addr %s282, 4
      %s284 = scalar_lea.vmem %s0, %s283
      %p285 = pneg %p40
      %p286 = pneg %p37
      %s287 = smul.u32 2, %s19
      %p288 = scmp.lt.s32.totalorder %s287, 3
      %s289 = scalar_select %p288, %s287, 3
      %s290 = smul.addr %s289, 8
      %s291 = scalar_lea.vmem %s1, %s290
      %p292 = pneg %p66
      %p293 = pneg %p63
      %p294 = pneg %p87
      %p295 = pneg %p84
      %p296 = pneg %p108
      %p297 = pneg %p105
      %p298 = pneg %p129
      %p299 = pneg %p126
      %p300 = pneg %p150
      %p301 = pneg %p147
      %p302 = pneg %p171
      %p303 = pneg %p168
      %p304 = pneg %p192
      %p305 = pneg %p189
      %p306 = pneg %p218
      %p307 = pneg %p215
      %s308 = smul.u32 2, %s19
      %p309 = scmp.lt.s32.totalorder %s308, 3
      %s310 = scalar_select %p309, %s308, 3
      %s311 = smul.addr %s310, 8
      %s312 = scalar_lea.vmem %s8, %s311
      %s313 = smul.u32 2, %s19
      %p314 = scmp.lt.s32.totalorder %s313, 3
      %s315 = scalar_select %p314, %s313, 3
      %s316 = smul.addr %s315, 4
      %s317 = scalar_lea.vmem %s0, %s316
      %s318 = smul.u32 2, %s19
      %s319 = smul.u32 2, %s19
      %p320 = scmp.lt.s32.totalorder %s319, 3
      %s321 = scalar_select %p320, %s319, 3
      %s322 = smul.addr %s321, 8
      %s323 = scalar_lea.vmem %s1, %s322
      %s324 = smul.u32 2, %s19
      %s325 = smul.u32 2, %s19
      %p326 = scmp.lt.s32.totalorder %s325, 3
      %s327 = scalar_select %p326, %s325, 3
      %s328 = smul.addr %s327, 8
      %s329 = scalar_lea.vmem %s8, %s328
      %s330 = smul.u32 2, %s19
      %v332 = vld [vmem:[%s317] sm:$0xf]
      %v333 = vld [vmem:[%s317 + $0x4] sm:$0xf]
      %v334 = vld [vmem:[%s2] sm:$0xf]
      %v335 = vld [vmem:[%s2 + $0x4] sm:$0xf]
      %v336 = vld [vmem:[%s2 + $0x8] sm:$0xf]
      %v337 = vld [vmem:[%s2 + $0xc] sm:$0xf]
      %v338 = vld [vmem:[%s2 + $0x10] sm:$0xf]
      %v339 = vld [vmem:[%s2 + $0x14] sm:$0xf]
      %v340 = vld [vmem:[%s2 + $0x18] sm:$0xf]
      %v341 = vld [vmem:[%s2 + $0x1c] sm:$0xf]
      %v342 = vld [vmem:[%s3] sm:$0x1]
      %v344 = vlaneseq
      %v345 = vshrl.u32 %v344, 7
      %v346 = vsub.s32 0, %v345
      %v347 = vrot.slane %v342, %v346
      %v351 = vunpack.c.l.b16 %v332
      %v352 = vunpack.c.l.b16 %v333
      %v353 = vpack.c.b16 %v352, %v351
      %v362 = vunpack.c.l.b16 %v334
      %v363 = vunpack.c.l.b16 %v335
      %v364 = vunpack.c.l.b16 %v336
      %v365 = vunpack.c.l.b16 %v337
      %v366 = vunpack.c.l.b16 %v338
      %v367 = vunpack.c.l.b16 %v339
      %v368 = vunpack.c.l.b16 %v340
      %v369 = vunpack.c.l.b16 %v341
      %v370 = vpack.c.b16 %v363, %v362
      %v371 = vpack.c.b16 %v365, %v364
      %v372 = vpack.c.b16 %v367, %v366
      %v373 = vpack.c.b16 %v369, %v368
      %vm378 = vcmask 523264
      %v380 = vsel %vm378, %v353, 0
      %382 = vmatprep.subr.bf16.mxu0 0
      %383 = vmatpush1.bf16.msra.mxu0 %v370
      %384 = vmatprep.subr.bf16.mxu0 0
      %385 = vmatpush1.bf16.msra.mxu0 %v371
      %386 = vmatprep.subr.bf16.mxu0 0
      %387 = vmatpush1.bf16.msra.mxu0 %v372
      %388 = vmatprep.subr.bf16.mxu0 0
      %389 = vmatpush1.bf16.msra.mxu0 %v373
      %390 = vmatprep.subr.bf16.mxu0 0
      %391 = vmatpush1.bf16.msra.mxu0 0
      %392 = vmatprep.subr.bf16.mxu0 0
      %393 = vmatpush1.bf16.msra.mxu0 0
      %394 = vmatprep.subr.bf16.mxu0 0
      %395 = vmatpush1.bf16.msra.mxu0 0
      %396 = vmatprep.subr.bf16.mxu0 0
      %397 = vmatpush1.bf16.msra.mxu0 0
      %398 = vmatprep.subr.bf16.mxu0 0
      %399 = vmatpush1.bf16.msra.mxu0 0
      %400 = vmatprep.subr.bf16.mxu0 0
      %401 = vmatpush1.bf16.msra.mxu0 0
      %402 = vmatprep.subr.bf16.mxu0 0
      %403 = vmatpush1.bf16.msra.mxu0 0
      %404 = vmatprep.subr.bf16.mxu0 0
      %405 = vmatpush1.bf16.msra.mxu0 0
      %406 = vmatprep.subr.bf16.mxu0 0
      %407 = vmatpush1.bf16.msra.mxu0 0
      %408 = vmatprep.subr.bf16.mxu0 0
      %409 = vmatpush1.bf16.msra.mxu0 0
      %410 = vmatprep.subr.bf16.mxu0 0
      %411 = vmatpush1.bf16.msra.mxu0 0
      %412 = vmatprep.subr.bf16.mxu0 0
      %413 = vmatpush1.bf16.msra.mxu0 0
      %414 = vmatprep.mubr.bf16.mxu0 0
      %415 = vmatmul.mubr.bf16.gmra.mrb[0].mxu0 %v380
      %v416 = vpop.f32.mrb[0].mxu0
      %v417 = vadd.f32 %v347, %v416
      %v418 = vpop.f32.mrb[0].mxu0
      %v419 = vpop.f32.mrb[0].mxu0
      %v420 = vadd.f32 %v347, %v419
      %v421 = vpop.f32.mrb[0].mxu0
      %422 = vdwg.mxu0
      %v423 = vmax.f32 %v417, 0.0
      %v424 = vmax.f32 %v420, 0.0
      %v425 = vpack.c.bf16 %v424, %v423
      %v426 = vld [vmem:[%s4] sm:$0xf]
      %v427 = vld [vmem:[%s4 + $0x4] sm:$0xf]
      %v428 = vld [vmem:[%s4 + $0x8] sm:$0xf]
      %v429 = vld [vmem:[%s4 + $0xc] sm:$0xf]
      %v430 = vld [vmem:[%s4 + $0x10] sm:$0xf]
      %v431 = vld [vmem:[%s4 + $0x14] sm:$0xf]
      %v432 = vld [vmem:[%s4 + $0x18] sm:$0xf]
      %v433 = vld [vmem:[%s4 + $0x1c] sm:$0xf]
      %v434 = vld [vmem:[%s4 + $0x20] sm:$0xf]
      %v435 = vld [vmem:[%s4 + $0x24] sm:$0xf]
      %v436 = vld [vmem:[%s4 + $0x28] sm:$0xf]
      %v437 = vld [vmem:[%s4 + $0x2c] sm:$0xf]
      %v438 = vld [vmem:[%s4 + $0x30] sm:$0xf]
      %v439 = vld [vmem:[%s4 + $0x34] sm:$0xf]
      %v440 = vld [vmem:[%s4 + $0x38] sm:$0xf]
      %v441 = vld [vmem:[%s4 + $0x3c] sm:$0xf]
      %v442 = vld [vmem:[%s5] sm:$0x1]
      %v444 = vlaneseq
      %v445 = vshrl.u32 %v444, 7
      %v446 = vsub.s32 0, %v445
      %v447 = vrot.slane %v442, %v446
      %v465 = vunpack.c.l.b16 %v426
      %v466 = vunpack.c.l.b16 %v427
      %v467 = vunpack.c.l.b16 %v428
      %v468 = vunpack.c.l.b16 %v429
      %v469 = vunpack.c.l.b16 %v430
      %v470 = vunpack.c.l.b16 %v431
      %v471 = vunpack.c.l.b16 %v432
      %v472 = vunpack.c.l.b16 %v433
      %v473 = vunpack.c.l.b16 %v434
      %v474 = vunpack.c.l.b16 %v435
      %v475 = vunpack.c.l.b16 %v436
      %v476 = vunpack.c.l.b16 %v437
      %v477 = vunpack.c.l.b16 %v438
      %v478 = vunpack.c.l.b16 %v439
      %v479 = vunpack.c.l.b16 %v440
      %v480 = vunpack.c.l.b16 %v441
      %v481 = vpack.c.b16 %v466, %v465
      %v482 = vpack.c.b16 %v468, %v467
      %v483 = vpack.c.b16 %v470, %v469
      %v484 = vpack.c.b16 %v472, %v471
      %v485 = vpack.c.b16 %v474, %v473
      %v486 = vpack.c.b16 %v476, %v475
      %v487 = vpack.c.b16 %v478, %v477
      %v488 = vpack.c.b16 %v480, %v479
      %497 = vmatprep.subr.bf16.mxu0 0
      %498 = vmatpush1.bf16.msra.mxu0 %v481
      %499 = vmatprep.subr.bf16.mxu0 0
      %500 = vmatpush1.bf16.msra.mxu0 %v482
      %501 = vmatprep.subr.bf16.mxu0 0
      %502 = vmatpush1.bf16.msra.mxu0 %v483
      %503 = vmatprep.subr.bf16.mxu0 0
      %504 = vmatpush1.bf16.msra.mxu0 %v484
      %505 = vmatprep.subr.bf16.mxu0 0
      %506 = vmatpush1.bf16.msra.mxu0 %v485
      %507 = vmatprep.subr.bf16.mxu0 0
      %508 = vmatpush1.bf16.msra.mxu0 %v486
      %509 = vmatprep.subr.bf16.mxu0 0
      %510 = vmatpush1.bf16.msra.mxu0 %v487
      %511 = vmatprep.subr.bf16.mxu0 0
      %512 = vmatpush1.bf16.msra.mxu0 %v488
      %513 = vmatprep.subr.bf16.mxu0 0
      %514 = vmatpush1.bf16.msra.mxu0 0
      %515 = vmatprep.subr.bf16.mxu0 0
      %516 = vmatpush1.bf16.msra.mxu0 0
      %517 = vmatprep.subr.bf16.mxu0 0
      %518 = vmatpush1.bf16.msra.mxu0 0
      %519 = vmatprep.subr.bf16.mxu0 0
      %520 = vmatpush1.bf16.msra.mxu0 0
      %521 = vmatprep.subr.bf16.mxu0 0
      %522 = vmatpush1.bf16.msra.mxu0 0
      %523 = vmatprep.subr.bf16.mxu0 0
      %524 = vmatpush1.bf16.msra.mxu0 0
      %525 = vmatprep.subr.bf16.mxu0 0
      %526 = vmatpush1.bf16.msra.mxu0 0
      %527 = vmatprep.subr.bf16.mxu0 0
      %528 = vmatpush1.bf16.msra.mxu0 0
      %529 = vmatprep.mubr.bf16.mxu0 0
      %530 = vmatmul.mubr.bf16.gmra.mrb[0].mxu0 %v425
      %v531 = vpop.f32.mrb[0].mxu0
      %v532 = vadd.f32 %v447, %v531
      %v533 = vpop.f32.mrb[0].mxu0
      %v534 = vpop.f32.mrb[0].mxu0
      %v535 = vadd.f32 %v447, %v534
      %v536 = vpop.f32.mrb[0].mxu0
      %537 = vdwg.mxu0
      %v538 = vmax.f32 %v532, 0.0
      %v539 = vmax.f32 %v535, 0.0
      %v540 = vpack.c.bf16 %v539, %v538
      %v541 = vld [vmem:[%s6] sm:$0xf]
      %v542 = vld [vmem:[%s6 + $0x4] sm:$0xf]
      %v543 = vld [vmem:[%s6 + $0x8] sm:$0xf]
      %v544 = vld [vmem:[%s6 + $0xc] sm:$0xf]
      %v545 = vld [vmem:[%s6 + $0x10] sm:$0xf]
      %v546 = vld [vmem:[%s6 + $0x14] sm:$0xf]
      %v547 = vld [vmem:[%s6 + $0x18] sm:$0xf]
      %v548 = vld [vmem:[%s6 + $0x1c] sm:$0xf]
      %v549 = vld [vmem:[%s6 + $0x20] sm:$0xf]
      %v550 = vld [vmem:[%s6 + $0x24] sm:$0xf]
      %v551 = vld [vmem:[%s6 + $0x28] sm:$0xf]
      %v552 = vld [vmem:[%s6 + $0x2c] sm:$0xf]
      %v553 = vld [vmem:[%s6 + $0x30] sm:$0xf]
      %v554 = vld [vmem:[%s6 + $0x34] sm:$0xf]
      %v555 = vld [vmem:[%s6 + $0x38] sm:$0xf]
      %v556 = vld [vmem:[%s6 + $0x3c] sm:$0xf]
      %v557 = vld [vmem:[%s7] sm:$0x1]
      %v559 = vlaneseq
      %v560 = vshrl.u32 %v559, 7
      %v561 = vsub.s32 0, %v560
      %v562 = vrot.slane %v557, %v561
      %v580 = vunpack.c.l.b16 %v541
      %v581 = vunpack.c.l.b16 %v542
      %v582 = vunpack.c.l.b16 %v543
      %v583 = vunpack.c.l.b16 %v544
      %v584 = vunpack.c.l.b16 %v545
      %v585 = vunpack.c.l.b16 %v546
      %v586 = vunpack.c.l.b16 %v547
      %v587 = vunpack.c.l.b16 %v548
      %v588 = vunpack.c.l.b16 %v549
      %v589 = vunpack.c.l.b16 %v550
      %v590 = vunpack.c.l.b16 %v551
      %v591 = vunpack.c.l.b16 %v552
      %v592 = vunpack.c.l.b16 %v553
      %v593 = vunpack.c.l.b16 %v554
      %v594 = vunpack.c.l.b16 %v555
      %v595 = vunpack.c.l.b16 %v556
      %v596 = vpack.c.b16 %v581, %v580
      %v597 = vpack.c.b16 %v583, %v582
      %v598 = vpack.c.b16 %v585, %v584
      %v599 = vpack.c.b16 %v587, %v586
      %v600 = vpack.c.b16 %v589, %v588
      %v601 = vpack.c.b16 %v591, %v590
      %v602 = vpack.c.b16 %v593, %v592
      %v603 = vpack.c.b16 %v595, %v594
      %612 = vmatprep.subr.bf16.mxu0 0
      %613 = vmatpush1.bf16.msra.mxu0 %v596
      %614 = vmatprep.subr.bf16.mxu0 0
      %615 = vmatpush1.bf16.msra.mxu0 %v597
      %616 = vmatprep.subr.bf16.mxu0 0
      %617 = vmatpush1.bf16.msra.mxu0 %v598
      %618 = vmatprep.subr.bf16.mxu0 0
      %619 = vmatpush1.bf16.msra.mxu0 %v599
      %620 = vmatprep.subr.bf16.mxu0 0
      %621 = vmatpush1.bf16.msra.mxu0 %v600
      %622 = vmatprep.subr.bf16.mxu0 0
      %623 = vmatpush1.bf16.msra.mxu0 %v601
      %624 = vmatprep.subr.bf16.mxu0 0
      %625 = vmatpush1.bf16.msra.mxu0 %v602
      %626 = vmatprep.subr.bf16.mxu0 0
      %627 = vmatpush1.bf16.msra.mxu0 %v603
      %628 = vmatprep.subr.bf16.mxu0 0
      %629 = vmatpush1.bf16.msra.mxu0 0
      %630 = vmatprep.subr.bf16.mxu0 0
      %631 = vmatpush1.bf16.msra.mxu0 0
      %632 = vmatprep.subr.bf16.mxu0 0
      %633 = vmatpush1.bf16.msra.mxu0 0
      %634 = vmatprep.subr.bf16.mxu0 0
      %635 = vmatpush1.bf16.msra.mxu0 0
      %636 = vmatprep.subr.bf16.mxu0 0
      %637 = vmatpush1.bf16.msra.mxu0 0
      %638 = vmatprep.subr.bf16.mxu0 0
      %639 = vmatpush1.bf16.msra.mxu0 0
      %640 = vmatprep.subr.bf16.mxu0 0
      %641 = vmatpush1.bf16.msra.mxu0 0
      %642 = vmatprep.subr.bf16.mxu0 0
      %643 = vmatpush1.bf16.msra.mxu0 0
      %644 = vmatprep.mubr.bf16.mxu0 0
      %645 = vmatmul.mubr.bf16.gmra.mrb[0].mxu0 %v540
      %v646 = vpop.f32.mrb[0].mxu0
      %v647 = vadd.f32 %v562, %v646
      %v648 = vpop.f32.mrb[0].mxu0
      %v649 = vpop.f32.mrb[0].mxu0
      %v650 = vadd.f32 %v562, %v649
      %v651 = vpop.f32.mrb[0].mxu0
      %652 = vdwg.mxu0
      %vm653 = vcmask 72704
      %v654 = vsel %vm653, %v647, -inf
      %655 = vmax.xlane.f32.xlu0 %v654
      %v656 = vpop.xlane.xlu0 %655
      %v657 = vsel %vm653, %v650, -inf
      %658 = vmax.xlane.f32.xlu0 %v657
      %v659 = vpop.xlane.xlu0 %658
      %v660 = vsub.f32 %v647, %v656
      %v661 = vsub.f32 %v650, %v659
      %v662 = vmul.f32 %v660, 1.442695
      %v663 = vpow.pop %v662
      %v664 = vmul.f32 %v661, 1.442695
      %v665 = vpow.pop %v664
      %v666 = vsel %vm653, %v663, 0.0
      %667 = vadd.xlane.f32.xlu0 %v666
      %v668 = vpop.xlane.xlu0 %667
      %v669 = vsel %vm653, %v665, 0.0
      %670 = vadd.xlane.f32.xlu0 %v669
      %v671 = vpop.xlane.xlu0 %670
      %v672 = vrcp.pop %v668
      %v673 = vrcp.pop %v671
      %v674 = vmul.f32 %v663, %v672
      %v675 = vmul.f32 %v665, %v673
      %v676 = vld [vmem:[%s323] sm:$0xff]
      %v677 = vld [vmem:[%s323 + $0x8] sm:$0xff]
      %680 = vrot.lane.b32.xlu0 %v676, 2
      %v681 = vpop.permute.xlu0 %680
      %682 = vrot.lane.b32.xlu0 %v677, 2
      %v683 = vpop.permute.xlu0 %682
      %v686 = vsub.f32 %v676, %v681
      %v687 = vsub.f32 %v677, %v683
      %v688 = vmul.f32 %v686, 0.5
      %v689 = vmul.f32 %v687, 0.5
      %692 = vrot.lane.b32.xlu0 %v688, 126
      %v693 = vpop.permute.xlu0 %692
      %694 = vrot.lane.b32.xlu0 %v689, 126
      %v695 = vpop.permute.xlu0 %694
      %v698 = vadd.f32 %v676, %v693
      %v699 = vadd.f32 %v677, %v695
      %v700 = vmul.f32 %v647, 0.1
      %v701 = vmul.f32 %v650, 0.1
      %v702 = vmul.f32 %v647, 0.2
      %v703 = vmul.f32 %v650, 0.2
      %v704 = vmin.f32 %v702, 4.1351666
      %v705 = vmin.f32 %v703, 4.1351666
      %707 = vset.pattern.permute.xlu0 2
      %708 = vperm.xlu0 %707, %v686
      %v709 = vpop.permute.xlu0 %708
      %712 = vset.pattern.permute.xlu0 2
      %713 = vperm.xlu0 %712, %v687
      %v714 = vpop.permute.xlu0 %713
      %v716 = vmul.f32 %v700, %v709
      %v717 = vmul.f32 %v701, %v714
      %719 = vset.pattern.permute.xlu0 0
      %720 = vperm.xlu0 %719, %v698
      %v721 = vpop.permute.xlu0 %720
      %724 = vset.pattern.permute.xlu0 0
      %725 = vperm.xlu0 %724, %v699
      %v726 = vpop.permute.xlu0 %725
      %v728 = vadd.f32 %v716, %v721
      %v729 = vadd.f32 %v717, %v726
      %730 = vset.pattern.permute.xlu0 3
      %731 = vperm.xlu0 %730, %v686
      %v732 = vpop.permute.xlu0 %731
      %734 = vset.pattern.permute.xlu0 3
      %735 = vperm.xlu0 %734, %v687
      %v736 = vpop.permute.xlu0 %735
      %v738 = vmul.f32 %v700, %v732
      %v739 = vmul.f32 %v701, %v736
      %740 = vset.pattern.permute.xlu0 1
      %741 = vperm.xlu0 %740, %v698
      %v742 = vpop.permute.xlu0 %741
      %744 = vset.pattern.permute.xlu0 1
      %745 = vperm.xlu0 %744, %v699
      %v746 = vpop.permute.xlu0 %745
      %v748 = vadd.f32 %v738, %v742
      %v749 = vadd.f32 %v739, %v746
      %v750 = vmul.f32 %v704, 1.442695
      %v751 = vpow.pop %v750
      %v752 = vmul.f32 %v705, 1.442695
      %v753 = vpow.pop %v752
      %v754 = vmul.f32 %v751, %v709
      %v755 = vmul.f32 %v753, %v714
      %v756 = vmul.f32 %v751, %v732
      %v757 = vmul.f32 %v753, %v736
      %v758 = vmul.f32 %v754, 0.5
      %v759 = vmul.f32 %v755, 0.5
      %762 = vrot.lane.b32.xlu0 %v758, 112
      %v763 = vpop.permute.xlu0 %762
      %764 = vrot.lane.b32.xlu0 %v759, 112
      %v765 = vpop.permute.xlu0 %764
      %v768 = vsub.f32 %v728, %v763
      %v769 = vsub.f32 %v729, %v765
      %v770 = vmax.f32 %v768, 0.0
      %v771 = vmax.f32 %v769, 0.0
      %v772 = vmin.f32 %v770, 64.0
      %v773 = vmin.f32 %v771, 64.0
      %v774 = vmul.f32 %v756, 0.5
      %v775 = vmul.f32 %v757, 0.5
      %778 = vrot.lane.b32.xlu0 %v774, 112
      %v779 = vpop.permute.xlu0 %778
      %780 = vrot.lane.b32.xlu0 %v775, 112
      %v781 = vpop.permute.xlu0 %780
      %v784 = vsub.f32 %v748, %v779
      %v785 = vsub.f32 %v749, %v781
      %v786 = vmax.f32 %v784, 0.0
      %v787 = vmax.f32 %v785, 0.0
      %v788 = vmin.f32 %v786, 64.0
      %v789 = vmin.f32 %v787, 64.0
      %v790 = vadd.f32 %v728, %v763
      %v791 = vadd.f32 %v729, %v765
      %v792 = vmax.f32 %v790, 0.0
      %v793 = vmax.f32 %v791, 0.0
      %v794 = vmin.f32 %v792, 64.0
      %v795 = vmin.f32 %v793, 64.0
      %v796 = vadd.f32 %v748, %v779
      %v797 = vadd.f32 %v749, %v781
      %v798 = vmax.f32 %v796, 0.0
      %v799 = vmax.f32 %v797, 0.0
      %v800 = vmin.f32 %v798, 64.0
      %v801 = vmin.f32 %v799, 64.0
      %804 = vrot.lane.b32.xlu0 %v772, 120
      %v805 = vpop.permute.xlu0 %804
      %806 = vrot.lane.b32.xlu0 %v773, 120
      %v807 = vpop.permute.xlu0 %806
      %812 = vrot.lane.b32.xlu0 %v788, 120
      %v813 = vpop.permute.xlu0 %812
      %814 = vrot.lane.b32.xlu0 %v789, 120
      %v815 = vpop.permute.xlu0 %814
      %820 = vrot.lane.b32.xlu0 %v794, 8
      %v821 = vpop.permute.xlu0 %820
      %822 = vrot.lane.b32.xlu0 %v795, 8
      %v823 = vpop.permute.xlu0 %822
      %828 = vrot.lane.b32.xlu0 %v800, 8
      %v829 = vpop.permute.xlu0 %828
      %830 = vrot.lane.b32.xlu0 %v801, 8
      %v831 = vpop.permute.xlu0 %830
      %vm834 = vcmask 64512
      %v835 = vsel %vm834, %v674, %v805
      %v836 = vsel %vm834, %v675, %v807
      %vm837 = vcmask 130048
      %v838 = vsel %vm837, %v835, %v813
      %v839 = vsel %vm837, %v836, %v815
      %vm840 = vcmask 195584
      %v841 = vsel %vm840, %v838, %v821
      %v842 = vsel %vm840, %v839, %v823
      %vm843 = vcmask 261120
      %v844 = vsel %vm843, %v841, %v829
      %v845 = vsel %vm843, %v842, %v831
      %vm846 = vcmask 326656
      %847 = vst.msk [vmem:[%s329] sm:$0xff] %vm846, %v844
      %848 = vst.msk [vmem:[%s329 + $0x8] sm:$0xff] %vm846, %v845
      %s849 = smul.u32 2, %s19
      %p850 = scmp.lt.s32.totalorder %s849, 3
      %s851 = scalar_select %p850, %s849, 3
      %s852 = smul.addr %s851, 8
      %s853 = scalar_lea.vmem %s8, %s852
      // Predicated region
      $region53: #{standard_roi_heads_forward.1} parent=51 // pred_check
        %p854 = pneg %p215
      $region54: #{standard_roi_heads_forward.1} parent=51 // pred_check_branch
        %856 = sbr.rel (%p854) target = $region56
      $region55: #{standard_roi_heads_forward.1} parent=51 // pred_region
        %s857 = smul.u32 2, %s19
      $region56: #{standard_roi_heads_forward.1} parent=51 // pred_fallthru
        _
    $region52: #{standard_roi_heads_forward.1} parent=5 // pred_fallthru
      _
    %p858 = scmp.le.s32.totalorder 2, %s14
    // Predicated region
    $region57: #{standard_roi_heads_forward.1} parent=5 // pred_check
      %p859 = pneg %p858
    $region58: #{standard_roi_heads_forward.1} parent=5 // pred_check_branch
      %861 = sbr.rel (%p859) target = $region60
    $region59: #{standard_roi_heads_forward.1} parent=5 // pred_region
      %s862 = ssub.s32 %s14, 2
      // Predicated region
      $region61: #{standard_roi_heads_forward.1} parent=59 // pred_check
        %p863 = pneg %p221
      $region62: #{standard_roi_heads_forward.1} parent=59 // pred_check_branch
        %865 = sbr.rel (%p863) target = $region64
      $region63: #{standard_roi_heads_forward.1} parent=59 // pred_region
        %s866 = smul.u32 2, %s20
        %p867 = scmp.lt.s32.totalorder %s866, 3
        %s868 = scalar_select %p867, %s866, 3
        %s869 = smul.addr %s868, 8
        %s870 = scalar_lea.vmem %s8, %s869
      $region64: #{standard_roi_heads_forward.1} parent=59 // pred_fallthru
        _
    $region60: #{standard_roi_heads_forward.1} parent=5 // pred_fallthru
      _
  $region6: #{standard_roi_heads_forward.1} parent=0 // loop_footer
    %s18 = sadd.s32 1, %s14
  $region7: #{standard_roi_heads_forward.1} parent=0 // loop_footer_branch
    %13 = sbr.rel target = $region3
  $region8: #{standard_roi_heads_forward.1} parent=0 // loop_exit
    _

</llo_original>
